<compile_context>
chip_gen: v7x
topology: tpu7x:2x2x1
jax: 0.10.0
libtpu: 0.0.40
codegen_flags: <defaults>
</compile_context>

<pallas_src>
import functools

import jax
import jax.numpy as jnp
from jax.experimental import pallas as pl
from jax.experimental.pallas import tpu as pltpu


def local_att_kernel(x_ref, pool_ref, eh_ref, ew_ref, w1_ref, shift_ref,
                     wh_ref, ww_ref, out_ref, *, H, W):
    """One grid step: TB batch elements, full C and H*W.

    x_ref/out_ref: (TB, C, H*W)   lane-dense
    pool_ref:      (H*W, H+W)     constant averaging matrix
    eh_ref:        (H, H*W)       one-hot expansion for s_h
    ew_ref:        (W, H*W)       one-hot expansion for s_w
    w1_ref:        (mid, C)       conv_1x1 weight with BN scale folded in
    shift_ref:     (mid, 1)       folded BN shift
    wh_ref/ww_ref: (C, mid)       F_h / F_w weights
    """
    TB, C, HW = x_ref.shape

    x = x_ref[...]                                  # (TB, C, HW), native dtype
    x2 = x.reshape(TB * C, HW)                      # layout no-op (C%8==0, HW%128==0)

    # ---- coordinate pooling: one lane-dense MXU matmul ----------------------
    # pooled[:, :H] = mean over w (x_h); pooled[:, H:] = mean over h (x_w)
    pooled = jnp.dot(x2, pool_ref[...],
                     preferred_element_type=jnp.float32)        # (TB*C, H+W) f32

    w1 = w1_ref[...]                                # (mid, C)
    shift = shift_ref[...]                          # (mid, 1)
    wh = wh_ref[...]                                # (C, mid)
    ww = ww_ref[...]                                # (C, mid)

    # ---- tiny middle section: per-batch 2D matmuls (no broadcast_to) --------
    s_h_parts, s_w_parts = [], []
    for b in range(TB):                             # TB is small (<= 8), static unroll
        pooled_b = pooled[b * C:(b + 1) * C, :]                     # (C, H+W)
        y = jnp.dot(w1, pooled_b, preferred_element_type=jnp.float32) + shift
        y = jnp.maximum(y, 0.0)                                     # (mid, H+W)
        s_h_parts.append(jax.nn.sigmoid(
            jnp.dot(wh, y[:, :H], preferred_element_type=jnp.float32)))   # (C, H)
        s_w_parts.append(jax.nn.sigmoid(
            jnp.dot(ww, y[:, H:], preferred_element_type=jnp.float32)))   # (C, W)
    s_h = s_h_parts[0] if TB == 1 else jnp.concatenate(s_h_parts, axis=0)  # (TB*C, H)
    s_w = s_w_parts[0] if TB == 1 else jnp.concatenate(s_w_parts, axis=0)  # (TB*C, W)

    # ---- gating: lane-dense expansion matmuls + one full-block store --------
    gate = (jnp.dot(s_h, eh_ref[...], preferred_element_type=jnp.float32) *
            jnp.dot(s_w, ew_ref[...], preferred_element_type=jnp.float32))  # (TB*C, HW)
    out = x2 * gate.astype(x2.dtype)                # multiply in x's dtype
    out_ref[...] = out.reshape(TB, C, HW).astype(out_ref.dtype)


def _pick_tb(B, per_b_bytes, target_bytes=2 << 20, max_unroll=8):
    """Batch elements per grid step: ~2 MiB blocks, >=4 grid steps when B allows,
    and a cap on the static per-batch unroll inside the kernel."""
    min_steps = 4 if B >= 4 else (2 if B >= 2 else 1)
    for tb in range(min(B, max_unroll), 0, -1):
        if B % tb:
            continue
        if B // tb < min_steps:
            continue
        if tb > 1 and tb * per_b_bytes > target_bytes:
            continue
        return tb
    return 1


def local_att_pallas(x, w1, bn_gamma, bn_beta, bn_mean, bn_var, wh, ww, eps=1e-5):
    B, C, H, W = x.shape
    mid = w1.shape[0]
    HW = H * W

    # Eval-mode BN folded into the 1x1 conv: y*scale + shift.
    inv_std = 1.0 / jnp.sqrt(bn_var.astype(jnp.float32) + eps)
    scale = bn_gamma.astype(jnp.float32) * inv_std
    w1f = scale[:, None] * w1.astype(jnp.float32)                        # (mid, C)
    shift = (bn_beta.astype(jnp.float32)
             - bn_mean.astype(jnp.float32) * scale).reshape(mid, 1)      # (mid, 1)
    whf = wh.astype(jnp.float32)
    wwf = ww.astype(jnp.float32)

    # Constant pooling / expansion matrices (block-resident in the kernel:
    # constant index_map => no re-DMA after the first step).
    rows = jnp.arange(HW)
    eye_h = (rows[:, None] // W == jnp.arange(H)[None, :]).astype(jnp.float32)  # (HW, H)
    eye_w = (rows[:, None] % W == jnp.arange(W)[None, :]).astype(jnp.float32)   # (HW, W)
    # For bf16 inputs keep the pooling matmul fully bf16 (no f32 upcast of x).
    mat_dtype = x.dtype if x.dtype == jnp.bfloat16 else jnp.float32
    pool_mat = jnp.concatenate([eye_h / W, eye_w / H], axis=1).astype(mat_dtype)  # (HW, H+W)
    exp_h = eye_h.T                                                      # (H, HW)
    exp_w = eye_w.T                                                      # (W, HW)

    x_flat = x.reshape(B, C, HW)          # lane-dense layout (free bitcast in XLA)

    TB = _pick_tb(B, C * HW * x.dtype.itemsize)
    grid = (B // TB,)

    # VMEM request computed from actual need (v7x has only 64 MiB per TC).
    block_bytes = TB * C * HW * x.dtype.itemsize
    weight_arrays = (pool_mat, exp_h, exp_w, w1f, shift, whf, wwf)
    weight_bytes = sum(int(a.size) * a.dtype.itemsize for a in weight_arrays)
    vmem_need = (4 * block_bytes                    # double-buffered x in + out blocks
                 + 2 * weight_bytes                 # (conservatively double-buffered)
                 + 3 * TB * C * HW * 4              # f32 gate intermediates
                 + (2 << 20))                       # headroom
    vmem_limit = int(min(max(vmem_need, 16 << 20), 48 << 20))

    kernel = functools.partial(local_att_kernel, H=H, W=W)

    out_flat = pl.pallas_call(
        kernel,
        out_shape=jax.ShapeDtypeStruct((B, C, HW), x.dtype),
        grid_spec=pltpu.PrefetchScalarGridSpec(
            num_scalar_prefetch=0,
            grid=grid,
            in_specs=[
                pl.BlockSpec((TB, C, HW), lambda b: (b, 0, 0)),   # x (lane-dense)
                pl.BlockSpec((HW, H + W), lambda b: (0, 0)),      # pooling matrix
                pl.BlockSpec((H, HW), lambda b: (0, 0)),          # s_h expansion
                pl.BlockSpec((W, HW), lambda b: (0, 0)),          # s_w expansion
                pl.BlockSpec((mid, C), lambda b: (0, 0)),         # conv_1x1 (BN-folded)
                pl.BlockSpec((mid, 1), lambda b: (0, 0)),         # folded BN shift
                pl.BlockSpec((C, mid), lambda b: (0, 0)),         # F_h weight
                pl.BlockSpec((C, mid), lambda b: (0, 0)),         # F_w weight
            ],
            out_specs=pl.BlockSpec((TB, C, HW), lambda b: (b, 0, 0)),
        ),
        compiler_params=pltpu.CompilerParams(
            dimension_semantics=("parallel",),
            vmem_limit_bytes=vmem_limit,
        ),
    )(x_flat, pool_mat, exp_h, exp_w, w1f, shift, whf, wwf)

    return out_flat.reshape(B, C, H, W)


def local_att_ref(x, w1, bn_gamma, bn_beta, bn_mean, bn_var, wh, ww, eps=1e-5):
    """Pure-JAX reference mirroring the PyTorch forward (eval-mode BN,
    expressed in the algebraically identical folded scale/shift form)."""
    B, C, H, W = x.shape
    inv_std = 1.0 / jnp.sqrt(bn_var + eps)
    scale = bn_gamma * inv_std
    shift = bn_beta - bn_mean * scale
    w1f = scale[:, None] * w1                       # conv_1x1 then BN(eval)
    x_h = jnp.mean(x, axis=3)                       # (B, C, H)
    x_w = jnp.mean(x, axis=2)                       # (B, C, W)
    cat = jnp.concatenate([x_h, x_w], axis=2)       # (B, C, H+W)
    y = jnp.einsum('mc,bcp->bmp', w1f, cat) + shift[None, :, None]
    y = jnp.maximum(y, 0.0)
    y_h, y_w = y[:, :, :H], y[:, :, H:]
    s_h = jax.nn.sigmoid(jnp.einsum('cm,bmh->bch', wh, y_h))
    s_w = jax.nn.sigmoid(jnp.einsum('cm,bmw->bcw', ww, y_w))
    return x * s_h[:, :, :, None] * s_w[:, :, None, :]


if __name__ == "__main__":
    B, C, H, W = 2, 32, 16, 16
    reduction = 4
    mid = C // reduction

    key = jax.random.PRNGKey(0)
    kx, k1, k2, k3, k4, k5, k6, k7 = jax.random.split(key, 8)

    x = jax.random.normal(kx, (B, C, H, W), dtype=jnp.float32)
    # 1x1 conv weights -> dense matrices over the channel dim
    w1 = jax.random.normal(k1, (mid, C), dtype=jnp.float32) * 0.1
    wh = jax.random.normal(k2, (C, mid), dtype=jnp.float32) * 0.1
    ww = jax.random.normal(k3, (C, mid), dtype=jnp.float32) * 0.1
    # BatchNorm parameters / running stats (eval-mode semantics)
    bn_gamma = 1.0 + 0.1 * jax.random.normal(k4, (mid,), dtype=jnp.float32)
    bn_beta = 0.1 * jax.random.normal(k5, (mid,), dtype=jnp.float32)
    bn_mean = 0.05 * jax.random.normal(k6, (mid,), dtype=jnp.float32)
    bn_var = 1.0 + 0.1 * jnp.abs(jax.random.normal(k7, (mid,), dtype=jnp.float32))

    out = local_att_pallas(x, w1, bn_gamma, bn_beta, bn_mean, bn_var, wh, ww)
    out = jax.block_until_ready(out)

    ref = local_att_ref(x, w1, bn_gamma, bn_beta, bn_mean, bn_var, wh, ww)
    assert out.shape == (B, C, H, W)
    assert jnp.allclose(out, ref, atol=2e-5, rtol=2e-5), "mismatch vs reference"

    print("KERNEL_OK")
</pallas_src>

<mosaic_0001>
module attributes {stable_mosaic.version = 11 : i64} {
  func.func @local_att_kernel(%arg0: i32, %arg1: memref<1x32x256xf32, #tpu.memory_space<vmem>>, %arg2: memref<256x32xf32, #tpu.memory_space<vmem>>, %arg3: memref<16x256xf32, #tpu.memory_space<vmem>>, %arg4: memref<16x256xf32, #tpu.memory_space<vmem>>, %arg5: memref<8x32xf32, #tpu.memory_space<vmem>>, %arg6: memref<8x1xf32, #tpu.memory_space<vmem>>, %arg7: memref<32x8xf32, #tpu.memory_space<vmem>>, %arg8: memref<32x8xf32, #tpu.memory_space<vmem>>, %arg9: memref<1x32x256xf32, #tpu.memory_space<vmem>>) attributes {dimension_semantics = [#tpu.dimension_semantics<parallel>], iteration_bounds = array<i64: 2>, scalar_prefetch = 0 : i64, scratch_operands = 0 : i64, tpu.core_type = #tpu.core_type<tc>, window_params = [{transform_indices = @transform_0, window_bounds = array<i64: 1, 32, 256>}, {pipeline_mode = #tpu.pipeline_mode<synchronous>, transform_indices = @transform_1, window_bounds = array<i64: 256, 32>}, {pipeline_mode = #tpu.pipeline_mode<synchronous>, transform_indices = @transform_2, window_bounds = array<i64: 16, 256>}, {pipeline_mode = #tpu.pipeline_mode<synchronous>, transform_indices = @transform_3, window_bounds = array<i64: 16, 256>}, {pipeline_mode = #tpu.pipeline_mode<synchronous>, transform_indices = @transform_4, window_bounds = array<i64: 8, 32>}, {pipeline_mode = #tpu.pipeline_mode<synchronous>, transform_indices = @transform_5, window_bounds = array<i64: 8, 1>}, {pipeline_mode = #tpu.pipeline_mode<synchronous>, transform_indices = @transform_6, window_bounds = array<i64: 32, 8>}, {pipeline_mode = #tpu.pipeline_mode<synchronous>, transform_indices = @transform_7, window_bounds = array<i64: 32, 8>}, {transform_indices = @transform_8, window_bounds = array<i64: 1, 32, 256>}]} {
    %c0 = arith.constant 0 : index
    %c0_0 = arith.constant 0 : index
    %c0_1 = arith.constant 0 : index
    %0 = vector.load %arg1[%c0, %c0_0, %c0_1] : memref<1x32x256xf32, #tpu.memory_space<vmem>>, vector<1x32x256xf32>
    %1 = vector.shape_cast %0 : vector<1x32x256xf32> to vector<32x256xf32>
    %c0_2 = arith.constant 0 : index
    %c0_3 = arith.constant 0 : index
    %2 = vector.load %arg2[%c0_2, %c0_3] : memref<256x32xf32, #tpu.memory_space<vmem>>, vector<256x32xf32>
    %cst = arith.constant dense<0.000000e+00> : vector<32x32xf32>
    %3 = tpu.matmul %1, %2, %cst {dimension_numbers = #tpu.dot_dimension_numbers<[1], [0], [0], [1], [0, 0, 1, 1], [], []>} : vector<32x256xf32>, vector<256x32xf32>, vector<32x32xf32> -> vector<32x32xf32>
    %c0_4 = arith.constant 0 : index
    %c0_5 = arith.constant 0 : index
    %4 = vector.load %arg5[%c0_4, %c0_5] : memref<8x32xf32, #tpu.memory_space<vmem>>, vector<8x32xf32>
    %c0_6 = arith.constant 0 : index
    %c0_7 = arith.constant 0 : index
    %5 = vector.load %arg6[%c0_6, %c0_7] : memref<8x1xf32, #tpu.memory_space<vmem>>, vector<8x1xf32>
    %c0_8 = arith.constant 0 : index
    %c0_9 = arith.constant 0 : index
    %6 = vector.load %arg7[%c0_8, %c0_9] : memref<32x8xf32, #tpu.memory_space<vmem>>, vector<32x8xf32>
    %c0_10 = arith.constant 0 : index
    %c0_11 = arith.constant 0 : index
    %7 = vector.load %arg8[%c0_10, %c0_11] : memref<32x8xf32, #tpu.memory_space<vmem>>, vector<32x8xf32>
    %cst_12 = arith.constant dense<0.000000e+00> : vector<8x32xf32>
    %8 = tpu.matmul %4, %3, %cst_12 {dimension_numbers = #tpu.dot_dimension_numbers<[1], [0], [0], [1], [0, 0, 1, 1], [], []>} : vector<8x32xf32>, vector<32x32xf32>, vector<8x32xf32> -> vector<8x32xf32>
    %9 = vector.broadcast %5 : vector<8x1xf32> to vector<8x32xf32>
    %10 = arith.addf %8, %9 : vector<8x32xf32>
    %cst_13 = arith.constant 0.000000e+00 : f32
    %11 = vector.broadcast %cst_13 : f32 to vector<8x32xf32>
    %12 = arith.maximumf %10, %11 : vector<8x32xf32>
    %13 = vector.extract_strided_slice %12 {offsets = [0, 0], sizes = [8, 16], strides = [1, 1]} : vector<8x32xf32> to vector<8x16xf32>
    %cst_14 = arith.constant dense<0.000000e+00> : vector<32x16xf32>
    %14 = tpu.matmul %6, %13, %cst_14 {dimension_numbers = #tpu.dot_dimension_numbers<[1], [0], [0], [1], [0, 0, 1, 1], [], []>} : vector<32x8xf32>, vector<8x16xf32>, vector<32x16xf32> -> vector<32x16xf32>
    %15 = arith.negf %14 : vector<32x16xf32>
    %16 = math.exp %15 : vector<32x16xf32>
    %cst_15 = arith.constant 1.000000e+00 : f32
    %17 = vector.broadcast %cst_15 : f32 to vector<32x16xf32>
    %18 = arith.addf %17, %16 : vector<32x16xf32>
    %19 = arith.divf %17, %18 : vector<32x16xf32>
    %20 = vector.extract_strided_slice %12 {offsets = [0, 16], sizes = [8, 16], strides = [1, 1]} : vector<8x32xf32> to vector<8x16xf32>
    %cst_16 = arith.constant dense<0.000000e+00> : vector<32x16xf32>
    %21 = tpu.matmul %7, %20, %cst_16 {dimension_numbers = #tpu.dot_dimension_numbers<[1], [0], [0], [1], [0, 0, 1, 1], [], []>} : vector<32x8xf32>, vector<8x16xf32>, vector<32x16xf32> -> vector<32x16xf32>
    %22 = arith.negf %21 : vector<32x16xf32>
    %23 = math.exp %22 : vector<32x16xf32>
    %cst_17 = arith.constant 1.000000e+00 : f32
    %24 = vector.broadcast %cst_17 : f32 to vector<32x16xf32>
    %25 = arith.addf %24, %23 : vector<32x16xf32>
    %26 = arith.divf %24, %25 : vector<32x16xf32>
    %c0_18 = arith.constant 0 : index
    %c0_19 = arith.constant 0 : index
    %27 = vector.load %arg3[%c0_18, %c0_19] : memref<16x256xf32, #tpu.memory_space<vmem>>, vector<16x256xf32>
    %cst_20 = arith.constant dense<0.000000e+00> : vector<32x256xf32>
    %28 = tpu.matmul %19, %27, %cst_20 {dimension_numbers = #tpu.dot_dimension_numbers<[1], [0], [0], [1], [0, 0, 1, 1], [], []>} : vector<32x16xf32>, vector<16x256xf32>, vector<32x256xf32> -> vector<32x256xf32>
    %c0_21 = arith.constant 0 : index
    %c0_22 = arith.constant 0 : index
    %29 = vector.load %arg4[%c0_21, %c0_22] : memref<16x256xf32, #tpu.memory_space<vmem>>, vector<16x256xf32>
    %cst_23 = arith.constant dense<0.000000e+00> : vector<32x256xf32>
    %30 = tpu.matmul %26, %29, %cst_23 {dimension_numbers = #tpu.dot_dimension_numbers<[1], [0], [0], [1], [0, 0, 1, 1], [], []>} : vector<32x16xf32>, vector<16x256xf32>, vector<32x256xf32> -> vector<32x256xf32>
    %31 = arith.mulf %28, %30 : vector<32x256xf32>
    %32 = arith.mulf %1, %31 : vector<32x256xf32>
    %33 = vector.shape_cast %32 : vector<32x256xf32> to vector<1x32x256xf32>
    %c0_24 = arith.constant 0 : index
    %c0_25 = arith.constant 0 : index
    %c0_26 = arith.constant 0 : index
    %34 = vector.load %arg9[%c0_24, %c0_25, %c0_26] : memref<1x32x256xf32, #tpu.memory_space<vmem>>, vector<1x32x256xf32>
    tpu.vector_store %arg9[%c0_24, %c0_25, %c0_26], %33 {strides = array<i32>} : memref<1x32x256xf32, #tpu.memory_space<vmem>>, vector<1x32x256xf32>,
    return
  }
  func.func @transform_0(%arg0: i32) -> (i32, i32, i32) {
    %c0_i32 = arith.constant 0 : i32
    %c0_i32_0 = arith.constant 0 : i32
    %c0_i32_1 = arith.constant 0 : i32
    return %arg0, %c0_i32, %c0_i32_0 : i32, i32, i32
  }
  func.func @transform_1(%arg0: i32) -> (i32, i32) {
    %c0_i32 = arith.constant 0 : i32
    %c0_i32_0 = arith.constant 0 : i32
    %c0_i32_1 = arith.constant 0 : i32
    return %c0_i32, %c0_i32_0 : i32, i32
  }
  func.func @transform_2(%arg0: i32) -> (i32, i32) {
    %c0_i32 = arith.constant 0 : i32
    %c0_i32_0 = arith.constant 0 : i32
    %c0_i32_1 = arith.constant 0 : i32
    return %c0_i32, %c0_i32_0 : i32, i32
  }
  func.func @transform_3(%arg0: i32) -> (i32, i32) {
    %c0_i32 = arith.constant 0 : i32
    %c0_i32_0 = arith.constant 0 : i32
    %c0_i32_1 = arith.constant 0 : i32
    return %c0_i32, %c0_i32_0 : i32, i32
  }
  func.func @transform_4(%arg0: i32) -> (i32, i32) {
    %c0_i32 = arith.constant 0 : i32
    %c0_i32_0 = arith.constant 0 : i32
    %c0_i32_1 = arith.constant 0 : i32
    return %c0_i32, %c0_i32_0 : i32, i32
  }
  func.func @transform_5(%arg0: i32) -> (i32, i32) {
    %c0_i32 = arith.constant 0 : i32
    %c0_i32_0 = arith.constant 0 : i32
    %c0_i32_1 = arith.constant 0 : i32
    return %c0_i32, %c0_i32_0 : i32, i32
  }
  func.func @transform_6(%arg0: i32) -> (i32, i32) {
    %c0_i32 = arith.constant 0 : i32
    %c0_i32_0 = arith.constant 0 : i32
    %c0_i32_1 = arith.constant 0 : i32
    return %c0_i32, %c0_i32_0 : i32, i32
  }
  func.func @transform_7(%arg0: i32) -> (i32, i32) {
    %c0_i32 = arith.constant 0 : i32
    %c0_i32_0 = arith.constant 0 : i32
    %c0_i32_1 = arith.constant 0 : i32
    return %c0_i32, %c0_i32_0 : i32, i32
  }
  func.func @transform_8(%arg0: i32) -> (i32, i32, i32) {
    %c0_i32 = arith.constant 0 : i32
    %c0_i32_0 = arith.constant 0 : i32
    %c0_i32_1 = arith.constant 0 : i32
    return %arg0, %c0_i32, %c0_i32_0 : i32, i32, i32
  }
}

</mosaic_0001>

<llo_original>
// kernel: tpu_custom_call.1
$region0: #{tpu_custom_call.1}
  #allocation0 [shape = 'u32[]', space=smem, size = 0x4, offset = 0x4, fixed_abs, tag = 'smem constant byte address 0x4 - core index']
  #allocation1 [shape = 'u32[144,128]{1,0:T(1,128)}', space=vmem, size = 0x12000, scoped, tag = 'internal scratch']
  %s0 = inlined_call_operand.vmem [shape: f32[2,32,256], index: 0, kind: input, shape index: {}]
  %s1 = inlined_call_operand.vmem [shape: f32[256,32], index: 1, kind: input, shape index: {}]
  %s2 = inlined_call_operand.vmem [shape: f32[16,256], index: 2, kind: input, shape index: {}]
  %s3 = inlined_call_operand.vmem [shape: f32[16,256], index: 3, kind: input, shape index: {}]
  %s4 = inlined_call_operand.vmem [shape: f32[8,32], index: 4, kind: input, shape index: {}]
  %s5 = inlined_call_operand.vmem [shape: f32[8,1], index: 5, kind: input, shape index: {}]
  %s6 = inlined_call_operand.vmem [shape: f32[32,8], index: 6, kind: input, shape index: {}]
  %s7 = inlined_call_operand.vmem [shape: f32[32,8], index: 7, kind: input, shape index: {}]
  %s8 = inlined_call_operand.hbm [shape: f32[2,32,256], index: 8, kind: output, shape index: {}]
  %s9 = sld [smem:[#allocation0]]
  $region65: #{tpu_custom_call.1} parent=0
    _
  %s11 = ssub.s32 1, %s9
  %s12 = scalar_select 0, %s11, %s9
  $region1: #{tpu_custom_call.1} parent=0
    #allocation2 [shape = 'u8[65536]{0}', space=vmem, size = 0x10000, scoped, tag = 'output window, operand 0']
    #allocation3 [shape = 's32[2]{0}', space=sflag, size = 0x8, scoped, tag = 'scoped memory for tpu_custom_call.1']
    %13 = vsyncpa [#allocation3], 0
    %s14 = scalar_lea.sflag [#allocation3], 1
    %15 = vsyncpa %s14, 0
    loop: start=0, step=1, limit=4
    $region2: #{tpu_custom_call.1} parent=1 // loop_pre_header
      _
    $region3: #{tpu_custom_call.1} parent=1 // loop_header
      %s17 = sphi 0, %s21
      %p18 = scmp.ge.s32.totalorder %s17, 4
      %s27 = sphi 0, %s29
      %s30 = sphi 0, %s27
      %s31 = sphi 0, %s30
      %s47 = sphi 0, %s31
      %s51 = sphi 0, %s51
      %s53 = sphi 0, %s51
      %s54 = sphi 0, %s53
      %s68 = sphi 0, %s54
      %s72 = sphi 0, %s72
      %s74 = sphi 0, %s72
      %s75 = sphi 0, %s74
      %s89 = sphi 0, %s75
      %s93 = sphi 0, %s93
      %s95 = sphi 0, %s93
      %s96 = sphi 0, %s95
      %s110 = sphi 0, %s96
      %s114 = sphi 0, %s114
      %s116 = sphi 0, %s114
      %s117 = sphi 0, %s116
      %s131 = sphi 0, %s117
      %s135 = sphi 0, %s135
      %s137 = sphi 0, %s135
      %s138 = sphi 0, %s137
      %s152 = sphi 0, %s138
      %s156 = sphi 0, %s156
      %s158 = sphi 0, %s156
      %s159 = sphi 0, %s158
      %s173 = sphi 0, %s159
      %s177 = sphi 0, %s177
      %s179 = sphi 0, %s177
      %s180 = sphi 0, %s179
      %s194 = sphi 0, %s180
      %s200 = sphi 0, %s202
      %s203 = sphi 0, %s200
      %s204 = sphi 0, %s203
      %s220 = sphi 0, %s204
    $region4: #{tpu_custom_call.1} parent=1 // loop_header_branch
      %20 = sbr.rel (%p18) target = $region8
    $region5: #{tpu_custom_call.1} parent=1 // loop_body
      %s22 = ssub.s32 %s17, 1
      %s23 = ssub.s32 %s17, 2
      %s24 = sadd.s32 %s17, 1
      %s25 = ssub.s32 %s17, %s24
      %p26 = scmp.eq.s32.totalorder %s25, 0
      %s28 = sadd.s32 %s27, 1
      %s29 = scalar_select %p26, %s27, %s28
      %p32 = pneg %p26
      %p33 = scmp.eq.s32.totalorder %s17, 1
      %p34 = por %p32, %p33
      %p35 = scmp.ne.s32.totalorder %s27, %s30
      %p36 = scmp.eq.s32.totalorder %s17, 0
      %p37 = por %p35, %p36
      %p38 = scmp.ne.s32.totalorder %s27, %s30
      %p39 = scmp.eq.s32.totalorder %s22, 1
      %p40 = por %p38, %p39
      %p41 = scmp.ne.s32.totalorder %s30, %s31
      %p42 = scmp.eq.s32.totalorder %s22, 0
      %p43 = por %p41, %p42
      %p44 = scmp.ne.s32.totalorder %s30, %s31
      %p45 = scmp.eq.s32.totalorder %s23, 1
      %p46 = por %p44, %p45
      %p48 = scmp.ne.s32.totalorder %s31, %s47
      %p49 = scmp.eq.s32.totalorder %s23, 0
      %p50 = por %p48, %p49
      %s52 = sadd.s32 %s51, 1
      %p55 = scmp.eq.s32.totalorder %s17, 1
      %p56 = scmp.ne.s32.totalorder %s51, %s53
      %p57 = scmp.eq.s32.totalorder %s17, 0
      %p58 = por %p56, %p57
      %p59 = scmp.ne.s32.totalorder %s51, %s53
      %p60 = scmp.eq.s32.totalorder %s22, 1
      %p61 = por %p59, %p60
      %p62 = scmp.ne.s32.totalorder %s53, %s54
      %p63 = scmp.eq.s32.totalorder %s22, 0
      %p64 = por %p62, %p63
      %p65 = scmp.ne.s32.totalorder %s53, %s54
      %p66 = scmp.eq.s32.totalorder %s23, 1
      %p67 = por %p65, %p66
      %p69 = scmp.ne.s32.totalorder %s54, %s68
      %p70 = scmp.eq.s32.totalorder %s23, 0
      %p71 = por %p69, %p70
      %s73 = sadd.s32 %s72, 1
      %p76 = scmp.eq.s32.totalorder %s17, 1
      %p77 = scmp.ne.s32.totalorder %s72, %s74
      %p78 = scmp.eq.s32.totalorder %s17, 0
      %p79 = por %p77, %p78
      %p80 = scmp.ne.s32.totalorder %s72, %s74
      %p81 = scmp.eq.s32.totalorder %s22, 1
      %p82 = por %p80, %p81
      %p83 = scmp.ne.s32.totalorder %s74, %s75
      %p84 = scmp.eq.s32.totalorder %s22, 0
      %p85 = por %p83, %p84
      %p86 = scmp.ne.s32.totalorder %s74, %s75
      %p87 = scmp.eq.s32.totalorder %s23, 1
      %p88 = por %p86, %p87
      %p90 = scmp.ne.s32.totalorder %s75, %s89
      %p91 = scmp.eq.s32.totalorder %s23, 0
      %p92 = por %p90, %p91
      %s94 = sadd.s32 %s93, 1
      %p97 = scmp.eq.s32.totalorder %s17, 1
      %p98 = scmp.ne.s32.totalorder %s93, %s95
      %p99 = scmp.eq.s32.totalorder %s17, 0
      %p100 = por %p98, %p99
      %p101 = scmp.ne.s32.totalorder %s93, %s95
      %p102 = scmp.eq.s32.totalorder %s22, 1
      %p103 = por %p101, %p102
      %p104 = scmp.ne.s32.totalorder %s95, %s96
      %p105 = scmp.eq.s32.totalorder %s22, 0
      %p106 = por %p104, %p105
      %p107 = scmp.ne.s32.totalorder %s95, %s96
      %p108 = scmp.eq.s32.totalorder %s23, 1
      %p109 = por %p107, %p108
      %p111 = scmp.ne.s32.totalorder %s96, %s110
      %p112 = scmp.eq.s32.totalorder %s23, 0
      %p113 = por %p111, %p112
      %s115 = sadd.s32 %s114, 1
      %p118 = scmp.eq.s32.totalorder %s17, 1
      %p119 = scmp.ne.s32.totalorder %s114, %s116
      %p120 = scmp.eq.s32.totalorder %s17, 0
      %p121 = por %p119, %p120
      %p122 = scmp.ne.s32.totalorder %s114, %s116
      %p123 = scmp.eq.s32.totalorder %s22, 1
      %p124 = por %p122, %p123
      %p125 = scmp.ne.s32.totalorder %s116, %s117
      %p126 = scmp.eq.s32.totalorder %s22, 0
      %p127 = por %p125, %p126
      %p128 = scmp.ne.s32.totalorder %s116, %s117
      %p129 = scmp.eq.s32.totalorder %s23, 1
      %p130 = por %p128, %p129
      %p132 = scmp.ne.s32.totalorder %s117, %s131
      %p133 = scmp.eq.s32.totalorder %s23, 0
      %p134 = por %p132, %p133
      %s136 = sadd.s32 %s135, 1
      %p139 = scmp.eq.s32.totalorder %s17, 1
      %p140 = scmp.ne.s32.totalorder %s135, %s137
      %p141 = scmp.eq.s32.totalorder %s17, 0
      %p142 = por %p140, %p141
      %p143 = scmp.ne.s32.totalorder %s135, %s137
      %p144 = scmp.eq.s32.totalorder %s22, 1
      %p145 = por %p143, %p144
      %p146 = scmp.ne.s32.totalorder %s137, %s138
      %p147 = scmp.eq.s32.totalorder %s22, 0
      %p148 = por %p146, %p147
      %p149 = scmp.ne.s32.totalorder %s137, %s138
      %p150 = scmp.eq.s32.totalorder %s23, 1
      %p151 = por %p149, %p150
      %p153 = scmp.ne.s32.totalorder %s138, %s152
      %p154 = scmp.eq.s32.totalorder %s23, 0
      %p155 = por %p153, %p154
      %s157 = sadd.s32 %s156, 1
      %p160 = scmp.eq.s32.totalorder %s17, 1
      %p161 = scmp.ne.s32.totalorder %s156, %s158
      %p162 = scmp.eq.s32.totalorder %s17, 0
      %p163 = por %p161, %p162
      %p164 = scmp.ne.s32.totalorder %s156, %s158
      %p165 = scmp.eq.s32.totalorder %s22, 1
      %p166 = por %p164, %p165
      %p167 = scmp.ne.s32.totalorder %s158, %s159
      %p168 = scmp.eq.s32.totalorder %s22, 0
      %p169 = por %p167, %p168
      %p170 = scmp.ne.s32.totalorder %s158, %s159
      %p171 = scmp.eq.s32.totalorder %s23, 1
      %p172 = por %p170, %p171
      %p174 = scmp.ne.s32.totalorder %s159, %s173
      %p175 = scmp.eq.s32.totalorder %s23, 0
      %p176 = por %p174, %p175
      %s178 = sadd.s32 %s177, 1
      %p181 = scmp.eq.s32.totalorder %s17, 1
      %p182 = scmp.ne.s32.totalorder %s177, %s179
      %p183 = scmp.eq.s32.totalorder %s17, 0
      %p184 = por %p182, %p183
      %p185 = scmp.ne.s32.totalorder %s177, %s179
      %p186 = scmp.eq.s32.totalorder %s22, 1
      %p187 = por %p185, %p186
      %p188 = scmp.ne.s32.totalorder %s179, %s180
      %p189 = scmp.eq.s32.totalorder %s22, 0
      %p190 = por %p188, %p189
      %p191 = scmp.ne.s32.totalorder %s179, %s180
      %p192 = scmp.eq.s32.totalorder %s23, 1
      %p193 = por %p191, %p192
      %p195 = scmp.ne.s32.totalorder %s180, %s194
      %p196 = scmp.eq.s32.totalorder %s23, 0
      %p197 = por %p195, %p196
      %s198 = ssub.s32 %s17, %s24
      %p199 = scmp.eq.s32.totalorder %s198, 0
      %s201 = sadd.s32 %s200, 1
      %s202 = scalar_select %p199, %s200, %s201
      %p205 = pneg %p199
      %p206 = scmp.eq.s32.totalorder %s17, 1
      %p207 = por %p205, %p206
      %p208 = scmp.ne.s32.totalorder %s200, %s203
      %p209 = scmp.eq.s32.totalorder %s17, 0
      %p210 = por %p208, %p209
      %p211 = scmp.ne.s32.totalorder %s200, %s203
      %p212 = scmp.eq.s32.totalorder %s22, 1
      %p213 = por %p211, %p212
      %p214 = scmp.ne.s32.totalorder %s203, %s204
      %p215 = scmp.eq.s32.totalorder %s22, 0
      %p216 = por %p214, %p215
      %p217 = scmp.ne.s32.totalorder %s203, %s204
      %p218 = scmp.eq.s32.totalorder %s23, 1
      %p219 = por %p217, %p218
      %p221 = scmp.ne.s32.totalorder %s204, %s220
      %p222 = scmp.eq.s32.totalorder %s23, 0
      %p223 = por %p221, %p222
      %p224 = scmp.le.s32.totalorder 1, %s17
      %p225 = scmp.lt.s32.totalorder %s17, 3
      %p226 = pnand %p224, %p225
      %p227 = pneg %p226
      // Predicated region
      $region9: #{tpu_custom_call.1} parent=5 // pred_check
        _
      $region10: #{tpu_custom_call.1} parent=5 // pred_check_branch
        %229 = sbr.rel (%p226) target = $region12
      $region11: #{tpu_custom_call.1} parent=5 // pred_region
        %s230 = ssub.s32 %s17, 1
        // Predicated region
        $region13: #{tpu_custom_call.1} parent=11 // pred_check
          %p231 = pneg %p64
        $region14: #{tpu_custom_call.1} parent=11 // pred_check_branch
          %233 = sbr.rel (%p231) target = $region16
        $region15: #{tpu_custom_call.1} parent=11 // pred_region
          _
        $region16: #{tpu_custom_call.1} parent=11 // pred_fallthru
          _
        // Predicated region
        $region17: #{tpu_custom_call.1} parent=11 // pred_check
          %p234 = pneg %p85
        $region18: #{tpu_custom_call.1} parent=11 // pred_check_branch
          %236 = sbr.rel (%p234) target = $region20
        $region19: #{tpu_custom_call.1} parent=11 // pred_region
          _
        $region20: #{tpu_custom_call.1} parent=11 // pred_fallthru
          _
        // Predicated region
        $region21: #{tpu_custom_call.1} parent=11 // pred_check
          %p237 = pneg %p106
        $region22: #{tpu_custom_call.1} parent=11 // pred_check_branch
          %239 = sbr.rel (%p237) target = $region24
        $region23: #{tpu_custom_call.1} parent=11 // pred_region
          _
        $region24: #{tpu_custom_call.1} parent=11 // pred_fallthru
          _
        // Predicated region
        $region25: #{tpu_custom_call.1} parent=11 // pred_check
          %p240 = pneg %p127
        $region26: #{tpu_custom_call.1} parent=11 // pred_check_branch
          %242 = sbr.rel (%p240) target = $region28
        $region27: #{tpu_custom_call.1} parent=11 // pred_region
          _
        $region28: #{tpu_custom_call.1} parent=11 // pred_fallthru
          _
        // Predicated region
        $region29: #{tpu_custom_call.1} parent=11 // pred_check
          %p243 = pneg %p148
        $region30: #{tpu_custom_call.1} parent=11 // pred_check_branch
          %245 = sbr.rel (%p243) target = $region32
        $region31: #{tpu_custom_call.1} parent=11 // pred_region
          _
        $region32: #{tpu_custom_call.1} parent=11 // pred_fallthru
          _
        // Predicated region
        $region33: #{tpu_custom_call.1} parent=11 // pred_check
          %p246 = pneg %p169
        $region34: #{tpu_custom_call.1} parent=11 // pred_check_branch
          %248 = sbr.rel (%p246) target = $region36
        $region35: #{tpu_custom_call.1} parent=11 // pred_region
          _
        $region36: #{tpu_custom_call.1} parent=11 // pred_fallthru
          _
        // Predicated region
        $region37: #{tpu_custom_call.1} parent=11 // pred_check
          %p249 = pneg %p190
        $region38: #{tpu_custom_call.1} parent=11 // pred_check_branch
          %251 = sbr.rel (%p249) target = $region40
        $region39: #{tpu_custom_call.1} parent=11 // pred_region
          _
        $region40: #{tpu_custom_call.1} parent=11 // pred_fallthru
          _
      $region12: #{tpu_custom_call.1} parent=5 // pred_fallthru
        _
      %p252 = scmp.lt.s32.totalorder %s17, 2
      // Predicated region
      $region41: #{tpu_custom_call.1} parent=5 // pred_check
        %p253 = pneg %p252
      $region42: #{tpu_custom_call.1} parent=5 // pred_check_branch
        %255 = sbr.rel (%p253) target = $region44
      $region43: #{tpu_custom_call.1} parent=5 // pred_region
        // Predicated region
        $region45: #{tpu_custom_call.1} parent=43 // pred_check
          %p256 = pneg %p37
        $region46: #{tpu_custom_call.1} parent=43 // pred_check_branch
          %258 = sbr.rel (%p256) target = $region48
        $region47: #{tpu_custom_call.1} parent=43 // pred_region
          %p259 = scmp.lt.s32.totalorder %s17, 1
          %s260 = scalar_select %p259, %s17, 1
          %s261 = smul.addr %s260, 8
          %s262 = smul.addr %s261, 8
          %s263 = scalar_lea.vmem %s0, %s262
        $region48: #{tpu_custom_call.1} parent=43 // pred_fallthru
          _
      $region44: #{tpu_custom_call.1} parent=5 // pred_fallthru
        _
      %p264 = scmp.le.s32.totalorder 1, %s17
      %p265 = scmp.lt.s32.totalorder %s17, 3
      %p266 = pnand %p264, %p265
      %p267 = pneg %p266
      // Predicated region
      $region49: #{tpu_custom_call.1} parent=5 // pred_check
        _
      $region50: #{tpu_custom_call.1} parent=5 // pred_check_branch
        %269 = sbr.rel (%p266) target = $region52
      $region51: #{tpu_custom_call.1} parent=5 // pred_region
        %s270 = ssub.s32 %s17, 1
        %p271 = scmp.lt.s32.totalorder %s22, 1
        %s272 = scalar_select %p271, %s22, 1
        %s273 = smul.addr %s272, 8
        %s274 = smul.addr %s273, 8
        %s275 = scalar_lea.vmem %s0, %s274
        %p276 = pneg %p43
        %p277 = pneg %p40
        %p278 = pneg %p64
        %p279 = pneg %p61
        %p280 = pneg %p85
        %p281 = pneg %p82
        %p282 = pneg %p106
        %p283 = pneg %p103
        %p284 = pneg %p127
        %p285 = pneg %p124
        %p286 = pneg %p148
        %p287 = pneg %p145
        %p288 = pneg %p169
        %p289 = pneg %p166
        %p290 = pneg %p190
        %p291 = pneg %p187
        %p292 = pneg %p216
        %p293 = pneg %p213
        %s294 = sand.u32 %s203, 1
        %s295 = scalar_lea.sflag [#allocation3], %s294
        %s296 = sand.u32 %s203, 1
        %s297 = smul.addr %s296, 64
        %s298 = scalar_lea.vmem [#allocation2], %s297
        %p299 = scmp.lt.s32.totalorder %s22, 1
        %s300 = scalar_select %p299, %s22, 1
        %s301 = smul.addr %s300, 8
        %s302 = smul.addr %s301, 8
        %s303 = scalar_lea.vmem %s0, %s302
        %v304 = vld [vmem:[%s303] sm:$0xff]
        %v305 = vld [vmem:[%s303 + $0x8] sm:$0xff]
        %v306 = vld [vmem:[%s303 + $0x10] sm:$0xff]
        %v307 = vld [vmem:[%s303 + $0x18] sm:$0xff]
        %v308 = vld [vmem:[%s303 + $0x20] sm:$0xff]
        %v309 = vld [vmem:[%s303 + $0x28] sm:$0xff]
        %v310 = vld [vmem:[%s303 + $0x30] sm:$0xff]
        %v311 = vld [vmem:[%s303 + $0x38] sm:$0xff]
        %v312 = vld [vmem:[%s1] sm:$0xff]
        %v313 = vld [vmem:[%s1 + $0x8] sm:$0xff]
        %v314 = vld [vmem:[%s1 + $0x10] sm:$0xff]
        %v315 = vld [vmem:[%s1 + $0x18] sm:$0xff]
        %v316 = vld [vmem:[%s1 + $0x20] sm:$0xff]
        %v317 = vld [vmem:[%s1 + $0x28] sm:$0xff]
        %v318 = vld [vmem:[%s1 + $0x30] sm:$0xff]
        %v319 = vld [vmem:[%s1 + $0x38] sm:$0xff]
        %v320 = vld [vmem:[%s1 + $0x40] sm:$0xff]
        %v321 = vld [vmem:[%s1 + $0x48] sm:$0xff]
        %v322 = vld [vmem:[%s1 + $0x50] sm:$0xff]
        %v323 = vld [vmem:[%s1 + $0x58] sm:$0xff]
        %v324 = vld [vmem:[%s1 + $0x60] sm:$0xff]
        %v325 = vld [vmem:[%s1 + $0x68] sm:$0xff]
        %v326 = vld [vmem:[%s1 + $0x70] sm:$0xff]
        %v327 = vld [vmem:[%s1 + $0x78] sm:$0xff]
        %v328 = vld [vmem:[%s1 + $0x80] sm:$0xff]
        %v329 = vld [vmem:[%s1 + $0x88] sm:$0xff]
        %v330 = vld [vmem:[%s1 + $0x90] sm:$0xff]
        %v331 = vld [vmem:[%s1 + $0x98] sm:$0xff]
        %v332 = vld [vmem:[%s1 + $0xa0] sm:$0xff]
        %v333 = vld [vmem:[%s1 + $0xa8] sm:$0xff]
        %v334 = vld [vmem:[%s1 + $0xb0] sm:$0xff]
        %v335 = vld [vmem:[%s1 + $0xb8] sm:$0xff]
        %v336 = vld [vmem:[%s1 + $0xc0] sm:$0xff]
        %v337 = vld [vmem:[%s1 + $0xc8] sm:$0xff]
        %v338 = vld [vmem:[%s1 + $0xd0] sm:$0xff]
        %v339 = vld [vmem:[%s1 + $0xd8] sm:$0xff]
        %v340 = vld [vmem:[%s1 + $0xe0] sm:$0xff]
        %v341 = vld [vmem:[%s1 + $0xe8] sm:$0xff]
        %v342 = vld [vmem:[%s1 + $0xf0] sm:$0xff]
        %v343 = vld [vmem:[%s1 + $0xf8] sm:$0xff]
        %344 = vmatprep.subr.mxu0 0.0
        %345 = vmatpush1.msra.mxu0 %v312
        %346 = vmatprep.subr.mxu0 0.0
        %347 = vmatpush1.msra.mxu0 %v313
        %348 = vmatprep.subr.mxu0 0.0
        %349 = vmatpush1.msra.mxu0 %v314
        %350 = vmatprep.subr.mxu0 0.0
        %351 = vmatpush1.msra.mxu0 %v315
        %352 = vmatprep.subr.mxu0 0.0
        %353 = vmatpush1.msra.mxu0 %v316
        %354 = vmatprep.subr.mxu0 0.0
        %355 = vmatpush1.msra.mxu0 %v317
        %356 = vmatprep.subr.mxu0 0.0
        %357 = vmatpush1.msra.mxu0 %v318
        %358 = vmatprep.subr.mxu0 0.0
        %359 = vmatpush1.msra.mxu0 %v319
        %360 = vmatprep.subr.mxu0 0.0
        %361 = vmatpush1.msra.mxu0 %v320
        %362 = vmatprep.subr.mxu0 0.0
        %363 = vmatpush1.msra.mxu0 %v321
        %364 = vmatprep.subr.mxu0 0.0
        %365 = vmatpush1.msra.mxu0 %v322
        %366 = vmatprep.subr.mxu0 0.0
        %367 = vmatpush1.msra.mxu0 %v323
        %368 = vmatprep.subr.mxu0 0.0
        %369 = vmatpush1.msra.mxu0 %v324
        %370 = vmatprep.subr.mxu0 0.0
        %371 = vmatpush1.msra.mxu0 %v325
        %372 = vmatprep.subr.mxu0 0.0
        %373 = vmatpush1.msra.mxu0 %v326
        %374 = vmatprep.subr.mxu0 0.0
        %375 = vmatpush1.msra.mxu0 %v327
        %376 = vmatprep.subr.mxu0 0.0
        %377 = vmatpush1.msra.mxu0 %v328
        %378 = vmatprep.subr.mxu0 0.0
        %379 = vmatpush1.msra.mxu0 %v329
        %380 = vmatprep.subr.mxu0 0.0
        %381 = vmatpush1.msra.mxu0 %v330
        %382 = vmatprep.subr.mxu0 0.0
        %383 = vmatpush1.msra.mxu0 %v331
        %384 = vmatprep.subr.mxu0 0.0
        %385 = vmatpush1.msra.mxu0 %v332
        %386 = vmatprep.subr.mxu0 0.0
        %387 = vmatpush1.msra.mxu0 %v333
        %388 = vmatprep.subr.mxu0 0.0
        %389 = vmatpush1.msra.mxu0 %v334
        %390 = vmatprep.subr.mxu0 0.0
        %391 = vmatpush1.msra.mxu0 %v335
        %392 = vmatprep.subr.mxu0 0.0
        %393 = vmatpush1.msra.mxu0 %v336
        %394 = vmatprep.subr.mxu0 0.0
        %395 = vmatpush1.msra.mxu0 %v337
        %396 = vmatprep.subr.mxu0 0.0
        %397 = vmatpush1.msra.mxu0 %v338
        %398 = vmatprep.subr.mxu0 0.0
        %399 = vmatpush1.msra.mxu0 %v339
        %400 = vmatprep.subr.mxu0 0.0
        %401 = vmatpush1.msra.mxu0 %v340
        %402 = vmatprep.subr.mxu0 0.0
        %403 = vmatpush1.msra.mxu0 %v341
        %404 = vmatprep.subr.mxu0 0.0
        %405 = vmatpush1.msra.mxu0 %v342
        %406 = vmatprep.subr.mxu0 0.0
        %407 = vmatpush1.msra.mxu0 %v343
        %408 = vmatprep.mubr.f32.mxu0 %v305
        %409 = vmatmul.mubr.f32.gmra.mrb[0].mxu0 %v304
        %v410 = vpop.f32.mrb[0].mxu0
        %v411 = vadd.f32 0.0, %v410
        %v412 = vpop.f32.mrb[0].mxu0
        %413 = vmatprep.mubr.f32.mxu0 %v307
        %414 = vmatmul.mubr.f32.gmra.mrb[0].mxu0 %v306
        %v415 = vpop.f32.mrb[0].mxu0
        %v416 = vadd.f32 0.0, %v415
        %v417 = vpop.f32.mrb[0].mxu0
        %418 = vmatprep.mubr.f32.mxu0 %v309
        %419 = vmatmul.mubr.f32.gmra.mrb[0].mxu0 %v308
        %v420 = vpop.f32.mrb[0].mxu0
        %v421 = vadd.f32 0.0, %v420
        %v422 = vpop.f32.mrb[0].mxu0
        %423 = vmatprep.mubr.f32.mxu0 %v311
        %424 = vmatmul.mubr.f32.gmra.mrb[0].mxu0 %v310
        %v425 = vpop.f32.mrb[0].mxu0
        %v426 = vadd.f32 0.0, %v425
        %v427 = vpop.f32.mrb[0].mxu0
        %428 = vdwg.mxu0
        %v429 = vld [vmem:[%s4] sm:$0xff]
        %v430 = vld [vmem:[%s5] sm:$0xff]
        %v431 = vld [vmem:[%s6] sm:$0xff]
        %v432 = vld [vmem:[%s6 + $0x8] sm:$0xff]
        %v433 = vld [vmem:[%s6 + $0x10] sm:$0xff]
        %v434 = vld [vmem:[%s6 + $0x18] sm:$0xff]
        %v435 = vld [vmem:[%s7] sm:$0xff]
        %v436 = vld [vmem:[%s7 + $0x8] sm:$0xff]
        %v437 = vld [vmem:[%s7 + $0x10] sm:$0xff]
        %v438 = vld [vmem:[%s7 + $0x18] sm:$0xff]
        %440 = vset.pattern.permute.xlu0 0
        %441 = vperm.xlu0 %440, %v430
        %v442 = vpop.permute.xlu0 %441
        %vm444 = vcmask 261120
        %v446 = vsel %vm444, %v429, 0
        %448 = vmatprep.subr.mxu0 0.0
        %449 = vmatpush1.msra.mxu0 %v411
        %450 = vmatprep.subr.mxu0 0.0
        %451 = vmatpush1.msra.mxu0 %v416
        %452 = vmatprep.subr.mxu0 0.0
        %453 = vmatpush1.msra.mxu0 %v421
        %454 = vmatprep.subr.mxu0 0.0
        %455 = vmatpush1.msra.mxu0 %v426
        %456 = vmatprep.subr.mxu0 0.0
        %457 = vmatpush1.msra.mxu0 0.0
        %458 = vmatprep.subr.mxu0 0.0
        %459 = vmatpush1.msra.mxu0 0.0
        %460 = vmatprep.subr.mxu0 0.0
        %461 = vmatpush1.msra.mxu0 0.0
        %462 = vmatprep.subr.mxu0 0.0
        %463 = vmatpush1.msra.mxu0 0.0
        %464 = vmatprep.subr.mxu0 0.0
        %465 = vmatpush1.msra.mxu0 0.0
        %466 = vmatprep.subr.mxu0 0.0
        %467 = vmatpush1.msra.mxu0 0.0
        %468 = vmatprep.subr.mxu0 0.0
        %469 = vmatpush1.msra.mxu0 0.0
        %470 = vmatprep.subr.mxu0 0.0
        %471 = vmatpush1.msra.mxu0 0.0
        %472 = vmatprep.subr.mxu0 0.0
        %473 = vmatpush1.msra.mxu0 0.0
        %474 = vmatprep.subr.mxu0 0.0
        %475 = vmatpush1.msra.mxu0 0.0
        %476 = vmatprep.subr.mxu0 0.0
        %477 = vmatpush1.msra.mxu0 0.0
        %478 = vmatprep.subr.mxu0 0.0
        %479 = vmatpush1.msra.mxu0 0.0
        %480 = vmatprep.subr.mxu0 0.0
        %481 = vmatpush1.msra.mxu0 0.0
        %482 = vmatprep.subr.mxu0 0.0
        %483 = vmatpush1.msra.mxu0 0.0
        %484 = vmatprep.subr.mxu0 0.0
        %485 = vmatpush1.msra.mxu0 0.0
        %486 = vmatprep.subr.mxu0 0.0
        %487 = vmatpush1.msra.mxu0 0.0
        %488 = vmatprep.subr.mxu0 0.0
        %489 = vmatpush1.msra.mxu0 0.0
        %490 = vmatprep.subr.mxu0 0.0
        %491 = vmatpush1.msra.mxu0 0.0
        %492 = vmatprep.subr.mxu0 0.0
        %493 = vmatpush1.msra.mxu0 0.0
        %494 = vmatprep.subr.mxu0 0.0
        %495 = vmatpush1.msra.mxu0 0.0
        %496 = vmatprep.subr.mxu0 0.0
        %497 = vmatpush1.msra.mxu0 0.0
        %498 = vmatprep.subr.mxu0 0.0
        %499 = vmatpush1.msra.mxu0 0.0
        %500 = vmatprep.subr.mxu0 0.0
        %501 = vmatpush1.msra.mxu0 0.0
        %502 = vmatprep.subr.mxu0 0.0
        %503 = vmatpush1.msra.mxu0 0.0
        %504 = vmatprep.subr.mxu0 0.0
        %505 = vmatpush1.msra.mxu0 0.0
        %506 = vmatprep.subr.mxu0 0.0
        %507 = vmatpush1.msra.mxu0 0.0
        %508 = vmatprep.subr.mxu0 0.0
        %509 = vmatpush1.msra.mxu0 0.0
        %510 = vmatprep.subr.mxu0 0.0
        %511 = vmatpush1.msra.mxu0 0.0
        %512 = vmatprep.mubr.f32.mxu0 0.0
        %513 = vmatmul.mubr.f32.gmra.mrb[0].mxu0 %v446
        %v514 = vpop.f32.mrb[0].mxu0
        %v515 = vadd.f32 %v442, %v514
        %v516 = vpop.f32.mrb[0].mxu0
        %517 = vdwg.mxu0
        %v518 = vmax.f32 %v515, 0.0
        %vm519 = vcmask 64512
        %v521 = vsel %vm519, %v431, 0
        %v524 = vsel %vm519, %v432, 0
        %v527 = vsel %vm519, %v433, 0
        %v530 = vsel %vm519, %v434, 0
        %532 = vmatprep.subr.mxu0 0.0
        %533 = vmatpush1.msra.mxu0 %v518
        %534 = vmatprep.subr.mxu0 0.0
        %535 = vmatpush1.msra.mxu0 0.0
        %536 = vmatprep.subr.mxu0 0.0
        %537 = vmatpush1.msra.mxu0 0.0
        %538 = vmatprep.subr.mxu0 0.0
        %539 = vmatpush1.msra.mxu0 0.0
        %540 = vmatprep.subr.mxu0 0.0
        %541 = vmatpush1.msra.mxu0 0.0
        %542 = vmatprep.subr.mxu0 0.0
        %543 = vmatpush1.msra.mxu0 0.0
        %544 = vmatprep.subr.mxu0 0.0
        %545 = vmatpush1.msra.mxu0 0.0
        %546 = vmatprep.subr.mxu0 0.0
        %547 = vmatpush1.msra.mxu0 0.0
        %548 = vmatprep.subr.mxu0 0.0
        %549 = vmatpush1.msra.mxu0 0.0
        %550 = vmatprep.subr.mxu0 0.0
        %551 = vmatpush1.msra.mxu0 0.0
        %552 = vmatprep.subr.mxu0 0.0
        %553 = vmatpush1.msra.mxu0 0.0
        %554 = vmatprep.subr.mxu0 0.0
        %555 = vmatpush1.msra.mxu0 0.0
        %556 = vmatprep.subr.mxu0 0.0
        %557 = vmatpush1.msra.mxu0 0.0
        %558 = vmatprep.subr.mxu0 0.0
        %559 = vmatpush1.msra.mxu0 0.0
        %560 = vmatprep.subr.mxu0 0.0
        %561 = vmatpush1.msra.mxu0 0.0
        %562 = vmatprep.subr.mxu0 0.0
        %563 = vmatpush1.msra.mxu0 0.0
        %564 = vmatprep.subr.mxu0 0.0
        %565 = vmatpush1.msra.mxu0 0.0
        %566 = vmatprep.subr.mxu0 0.0
        %567 = vmatpush1.msra.mxu0 0.0
        %568 = vmatprep.subr.mxu0 0.0
        %569 = vmatpush1.msra.mxu0 0.0
        %570 = vmatprep.subr.mxu0 0.0
        %571 = vmatpush1.msra.mxu0 0.0
        %572 = vmatprep.subr.mxu0 0.0
        %573 = vmatpush1.msra.mxu0 0.0
        %574 = vmatprep.subr.mxu0 0.0
        %575 = vmatpush1.msra.mxu0 0.0
        %576 = vmatprep.subr.mxu0 0.0
        %577 = vmatpush1.msra.mxu0 0.0
        %578 = vmatprep.subr.mxu0 0.0
        %579 = vmatpush1.msra.mxu0 0.0
        %580 = vmatprep.subr.mxu0 0.0
        %581 = vmatpush1.msra.mxu0 0.0
        %582 = vmatprep.subr.mxu0 0.0
        %583 = vmatpush1.msra.mxu0 0.0
        %584 = vmatprep.subr.mxu0 0.0
        %585 = vmatpush1.msra.mxu0 0.0
        %586 = vmatprep.subr.mxu0 0.0
        %587 = vmatpush1.msra.mxu0 0.0
        %588 = vmatprep.subr.mxu0 0.0
        %589 = vmatpush1.msra.mxu0 0.0
        %590 = vmatprep.subr.mxu0 0.0
        %591 = vmatpush1.msra.mxu0 0.0
        %592 = vmatprep.subr.mxu0 0.0
        %593 = vmatpush1.msra.mxu0 0.0
        %594 = vmatprep.subr.mxu0 0.0
        %595 = vmatpush1.msra.mxu0 0.0
        %596 = vmatprep.mubr.f32.mxu0 0.0
        %597 = vmatmul.mubr.f32.gmra.mrb[0].mxu0 %v521
        %v598 = vpop.f32.mrb[0].mxu0
        %v599 = vadd.f32 0.0, %v598
        %v600 = vpop.f32.mrb[0].mxu0
        %601 = vmatprep.mubr.f32.mxu0 0.0
        %602 = vmatmul.mubr.f32.gmra.mrb[0].mxu0 %v524
        %v603 = vpop.f32.mrb[0].mxu0
        %v604 = vadd.f32 0.0, %v603
        %v605 = vpop.f32.mrb[0].mxu0
        %606 = vmatprep.mubr.f32.mxu0 0.0
        %607 = vmatmul.mubr.f32.gmra.mrb[0].mxu0 %v527
        %v608 = vpop.f32.mrb[0].mxu0
        %v609 = vadd.f32 0.0, %v608
        %v610 = vpop.f32.mrb[0].mxu0
        %611 = vmatprep.mubr.f32.mxu0 0.0
        %612 = vmatmul.mubr.f32.gmra.mrb[0].mxu0 %v530
        %v613 = vpop.f32.mrb[0].mxu0
        %v614 = vadd.f32 0.0, %v613
        %v615 = vpop.f32.mrb[0].mxu0
        %616 = vdwg.mxu0
        %v617 = vxor.u32 %v599, 2147483648
        %v618 = vxor.u32 %v604, 2147483648
        %v619 = vxor.u32 %v609, 2147483648
        %v620 = vxor.u32 %v614, 2147483648
        %v621 = vmul.f32 %v617, 1.442695
        %v622 = vpow.pop %v621
        %v623 = vmul.f32 %v618, 1.442695
        %v624 = vpow.pop %v623
        %v625 = vmul.f32 %v619, 1.442695
        %v626 = vpow.pop %v625
        %v627 = vmul.f32 %v620, 1.442695
        %v628 = vpow.pop %v627
        %v629 = vadd.f32 %v622, 1.0
        %v630 = vadd.f32 %v624, 1.0
        %v631 = vadd.f32 %v626, 1.0
        %v632 = vadd.f32 %v628, 1.0
        %v633 = vrcp.pop %v629
        %v634 = vmul.f32 1.0, %v633
        %v635 = vrcp.pop %v630
        %v636 = vmul.f32 1.0, %v635
        %v637 = vrcp.pop %v631
        %v638 = vmul.f32 1.0, %v637
        %v639 = vrcp.pop %v632
        %v640 = vmul.f32 1.0, %v639
        %642 = vrot.lane.b32.xlu0 %v518, 112
        %v643 = vpop.permute.xlu0 %642
        %v646 = vsel %vm519, %v435, 0
        %v649 = vsel %vm519, %v436, 0
        %v652 = vsel %vm519, %v437, 0
        %v655 = vsel %vm519, %v438, 0
        %657 = vmatprep.subr.mxu0 0.0
        %658 = vmatpush1.msra.mxu0 %v643
        %659 = vmatprep.subr.mxu0 0.0
        %660 = vmatpush1.msra.mxu0 0.0
        %661 = vmatprep.subr.mxu0 0.0
        %662 = vmatpush1.msra.mxu0 0.0
        %663 = vmatprep.subr.mxu0 0.0
        %664 = vmatpush1.msra.mxu0 0.0
        %665 = vmatprep.subr.mxu0 0.0
        %666 = vmatpush1.msra.mxu0 0.0
        %667 = vmatprep.subr.mxu0 0.0
        %668 = vmatpush1.msra.mxu0 0.0
        %669 = vmatprep.subr.mxu0 0.0
        %670 = vmatpush1.msra.mxu0 0.0
        %671 = vmatprep.subr.mxu0 0.0
        %672 = vmatpush1.msra.mxu0 0.0
        %673 = vmatprep.subr.mxu0 0.0
        %674 = vmatpush1.msra.mxu0 0.0
        %675 = vmatprep.subr.mxu0 0.0
        %676 = vmatpush1.msra.mxu0 0.0
        %677 = vmatprep.subr.mxu0 0.0
        %678 = vmatpush1.msra.mxu0 0.0
        %679 = vmatprep.subr.mxu0 0.0
        %680 = vmatpush1.msra.mxu0 0.0
        %681 = vmatprep.subr.mxu0 0.0
        %682 = vmatpush1.msra.mxu0 0.0
        %683 = vmatprep.subr.mxu0 0.0
        %684 = vmatpush1.msra.mxu0 0.0
        %685 = vmatprep.subr.mxu0 0.0
        %686 = vmatpush1.msra.mxu0 0.0
        %687 = vmatprep.subr.mxu0 0.0
        %688 = vmatpush1.msra.mxu0 0.0
        %689 = vmatprep.subr.mxu0 0.0
        %690 = vmatpush1.msra.mxu0 0.0
        %691 = vmatprep.subr.mxu0 0.0
        %692 = vmatpush1.msra.mxu0 0.0
        %693 = vmatprep.subr.mxu0 0.0
        %694 = vmatpush1.msra.mxu0 0.0
        %695 = vmatprep.subr.mxu0 0.0
        %696 = vmatpush1.msra.mxu0 0.0
        %697 = vmatprep.subr.mxu0 0.0
        %698 = vmatpush1.msra.mxu0 0.0
        %699 = vmatprep.subr.mxu0 0.0
        %700 = vmatpush1.msra.mxu0 0.0
        %701 = vmatprep.subr.mxu0 0.0
        %702 = vmatpush1.msra.mxu0 0.0
        %703 = vmatprep.subr.mxu0 0.0
        %704 = vmatpush1.msra.mxu0 0.0
        %705 = vmatprep.subr.mxu0 0.0
        %706 = vmatpush1.msra.mxu0 0.0
        %707 = vmatprep.subr.mxu0 0.0
        %708 = vmatpush1.msra.mxu0 0.0
        %709 = vmatprep.subr.mxu0 0.0
        %710 = vmatpush1.msra.mxu0 0.0
        %711 = vmatprep.subr.mxu0 0.0
        %712 = vmatpush1.msra.mxu0 0.0
        %713 = vmatprep.subr.mxu0 0.0
        %714 = vmatpush1.msra.mxu0 0.0
        %715 = vmatprep.subr.mxu0 0.0
        %716 = vmatpush1.msra.mxu0 0.0
        %717 = vmatprep.subr.mxu0 0.0
        %718 = vmatpush1.msra.mxu0 0.0
        %719 = vmatprep.subr.mxu0 0.0
        %720 = vmatpush1.msra.mxu0 0.0
        %721 = vmatprep.mubr.f32.mxu0 0.0
        %722 = vmatmul.mubr.f32.gmra.mrb[0].mxu0 %v646
        %v723 = vpop.f32.mrb[0].mxu0
        %v724 = vadd.f32 0.0, %v723
        %v725 = vpop.f32.mrb[0].mxu0
        %726 = vmatprep.mubr.f32.mxu0 0.0
        %727 = vmatmul.mubr.f32.gmra.mrb[0].mxu0 %v649
        %v728 = vpop.f32.mrb[0].mxu0
        %v729 = vadd.f32 0.0, %v728
        %v730 = vpop.f32.mrb[0].mxu0
        %731 = vmatprep.mubr.f32.mxu0 0.0
        %732 = vmatmul.mubr.f32.gmra.mrb[0].mxu0 %v652
        %v733 = vpop.f32.mrb[0].mxu0
        %v734 = vadd.f32 0.0, %v733
        %v735 = vpop.f32.mrb[0].mxu0
        %736 = vmatprep.mubr.f32.mxu0 0.0
        %737 = vmatmul.mubr.f32.gmra.mrb[0].mxu0 %v655
        %v738 = vpop.f32.mrb[0].mxu0
        %v739 = vadd.f32 0.0, %v738
        %v740 = vpop.f32.mrb[0].mxu0
        %741 = vdwg.mxu0
        %v742 = vxor.u32 %v724, 2147483648
        %v743 = vxor.u32 %v729, 2147483648
        %v744 = vxor.u32 %v734, 2147483648
        %v745 = vxor.u32 %v739, 2147483648
        %v746 = vmul.f32 %v742, 1.442695
        %v747 = vpow.pop %v746
        %v748 = vmul.f32 %v743, 1.442695
        %v749 = vpow.pop %v748
        %v750 = vmul.f32 %v744, 1.442695
        %v751 = vpow.pop %v750
        %v752 = vmul.f32 %v745, 1.442695
        %v753 = vpow.pop %v752
        %v754 = vadd.f32 %v747, 1.0
        %v755 = vadd.f32 %v749, 1.0
        %v756 = vadd.f32 %v751, 1.0
        %v757 = vadd.f32 %v753, 1.0
        %v758 = vrcp.pop %v754
        %v759 = vmul.f32 1.0, %v758
        %v760 = vrcp.pop %v755
        %v761 = vmul.f32 1.0, %v760
        %v762 = vrcp.pop %v756
        %v763 = vmul.f32 1.0, %v762
        %v764 = vrcp.pop %v757
        %v765 = vmul.f32 1.0, %v764
        %v766 = vld [vmem:[%s2] sm:$0xff]
        %v767 = vld [vmem:[%s2 + $0x8] sm:$0xff]
        %v768 = vld [vmem:[%s2 + $0x10] sm:$0xff]
        %v769 = vld [vmem:[%s2 + $0x18] sm:$0xff]
        %vm770 = vcmask 130048
        %v772 = vsel %vm770, %v634, 0
        %v775 = vsel %vm770, %v636, 0
        %v778 = vsel %vm770, %v638, 0
        %v781 = vsel %vm770, %v640, 0
        %783 = vmatprep.subr.mxu0 %v767
        %784 = vmatpush1.msra.mxu0 %v766
        %785 = vmatprep.subr.mxu0 %v769
        %786 = vmatpush1.msra.mxu0 %v768
        %787 = vmatprep.subr.mxu0 0.0
        %788 = vmatpush1.msra.mxu0 0.0
        %789 = vmatprep.subr.mxu0 0.0
        %790 = vmatpush1.msra.mxu0 0.0
        %791 = vmatprep.subr.mxu0 0.0
        %792 = vmatpush1.msra.mxu0 0.0
        %793 = vmatprep.subr.mxu0 0.0
        %794 = vmatpush1.msra.mxu0 0.0
        %795 = vmatprep.subr.mxu0 0.0
        %796 = vmatpush1.msra.mxu0 0.0
        %797 = vmatprep.subr.mxu0 0.0
        %798 = vmatpush1.msra.mxu0 0.0
        %799 = vmatprep.subr.mxu0 0.0
        %800 = vmatpush1.msra.mxu0 0.0
        %801 = vmatprep.subr.mxu0 0.0
        %802 = vmatpush1.msra.mxu0 0.0
        %803 = vmatprep.subr.mxu0 0.0
        %804 = vmatpush1.msra.mxu0 0.0
        %805 = vmatprep.subr.mxu0 0.0
        %806 = vmatpush1.msra.mxu0 0.0
        %807 = vmatprep.subr.mxu0 0.0
        %808 = vmatpush1.msra.mxu0 0.0
        %809 = vmatprep.subr.mxu0 0.0
        %810 = vmatpush1.msra.mxu0 0.0
        %811 = vmatprep.subr.mxu0 0.0
        %812 = vmatpush1.msra.mxu0 0.0
        %813 = vmatprep.subr.mxu0 0.0
        %814 = vmatpush1.msra.mxu0 0.0
        %815 = vmatprep.subr.mxu0 0.0
        %816 = vmatpush1.msra.mxu0 0.0
        %817 = vmatprep.subr.mxu0 0.0
        %818 = vmatpush1.msra.mxu0 0.0
        %819 = vmatprep.subr.mxu0 0.0
        %820 = vmatpush1.msra.mxu0 0.0
        %821 = vmatprep.subr.mxu0 0.0
        %822 = vmatpush1.msra.mxu0 0.0
        %823 = vmatprep.subr.mxu0 0.0
        %824 = vmatpush1.msra.mxu0 0.0
        %825 = vmatprep.subr.mxu0 0.0
        %826 = vmatpush1.msra.mxu0 0.0
        %827 = vmatprep.subr.mxu0 0.0
        %828 = vmatpush1.msra.mxu0 0.0
        %829 = vmatprep.subr.mxu0 0.0
        %830 = vmatpush1.msra.mxu0 0.0
        %831 = vmatprep.subr.mxu0 0.0
        %832 = vmatpush1.msra.mxu0 0.0
        %833 = vmatprep.subr.mxu0 0.0
        %834 = vmatpush1.msra.mxu0 0.0
        %835 = vmatprep.subr.mxu0 0.0
        %836 = vmatpush1.msra.mxu0 0.0
        %837 = vmatprep.subr.mxu0 0.0
        %838 = vmatpush1.msra.mxu0 0.0
        %839 = vmatprep.subr.mxu0 0.0
        %840 = vmatpush1.msra.mxu0 0.0
        %841 = vmatprep.subr.mxu0 0.0
        %842 = vmatpush1.msra.mxu0 0.0
        %843 = vmatprep.subr.mxu0 0.0
        %844 = vmatpush1.msra.mxu0 0.0
        %845 = vmatprep.subr.mxu0 0.0
        %846 = vmatpush1.msra.mxu0 0.0
        %847 = vmatprep.mubr.f32.mxu0 0.0
        %848 = vmatmul.mubr.f32.gmra.mrb[0].mxu0 %v772
        %v849 = vpop.f32.mrb[0].mxu0
        %v850 = vadd.f32 0.0, %v849
        %v851 = vpop.f32.mrb[0].mxu0
        %v852 = vadd.f32 0.0, %v851
        %853 = vmatprep.mubr.f32.mxu0 0.0
        %854 = vmatmul.mubr.f32.gmra.mrb[0].mxu0 %v775
        %v855 = vpop.f32.mrb[0].mxu0
        %v856 = vadd.f32 0.0, %v855
        %v857 = vpop.f32.mrb[0].mxu0
        %v858 = vadd.f32 0.0, %v857
        %859 = vmatprep.mubr.f32.mxu0 0.0
        %860 = vmatmul.mubr.f32.gmra.mrb[0].mxu0 %v778
        %v861 = vpop.f32.mrb[0].mxu0
        %v862 = vadd.f32 0.0, %v861
        %v863 = vpop.f32.mrb[0].mxu0
        %v864 = vadd.f32 0.0, %v863
        %865 = vmatprep.mubr.f32.mxu0 0.0
        %866 = vmatmul.mubr.f32.gmra.mrb[0].mxu0 %v781
        %v867 = vpop.f32.mrb[0].mxu0
        %v868 = vadd.f32 0.0, %v867
        %v869 = vpop.f32.mrb[0].mxu0
        %v870 = vadd.f32 0.0, %v869
        %871 = vdwg.mxu0
        %v872 = vld [vmem:[%s3] sm:$0xff]
        %v873 = vld [vmem:[%s3 + $0x8] sm:$0xff]
        %v874 = vld [vmem:[%s3 + $0x10] sm:$0xff]
        %v875 = vld [vmem:[%s3 + $0x18] sm:$0xff]
        %v877 = vsel %vm770, %v759, 0
        %v880 = vsel %vm770, %v761, 0
        %v883 = vsel %vm770, %v763, 0
        %v886 = vsel %vm770, %v765, 0
        %888 = vmatprep.subr.mxu0 %v873
        %889 = vmatpush1.msra.mxu0 %v872
        %890 = vmatprep.subr.mxu0 %v875
        %891 = vmatpush1.msra.mxu0 %v874
        %892 = vmatprep.subr.mxu0 0.0
        %893 = vmatpush1.msra.mxu0 0.0
        %894 = vmatprep.subr.mxu0 0.0
        %895 = vmatpush1.msra.mxu0 0.0
        %896 = vmatprep.subr.mxu0 0.0
        %897 = vmatpush1.msra.mxu0 0.0
        %898 = vmatprep.subr.mxu0 0.0
        %899 = vmatpush1.msra.mxu0 0.0
        %900 = vmatprep.subr.mxu0 0.0
        %901 = vmatpush1.msra.mxu0 0.0
        %902 = vmatprep.subr.mxu0 0.0
        %903 = vmatpush1.msra.mxu0 0.0
        %904 = vmatprep.subr.mxu0 0.0
        %905 = vmatpush1.msra.mxu0 0.0
        %906 = vmatprep.subr.mxu0 0.0
        %907 = vmatpush1.msra.mxu0 0.0
        %908 = vmatprep.subr.mxu0 0.0
        %909 = vmatpush1.msra.mxu0 0.0
        %910 = vmatprep.subr.mxu0 0.0
        %911 = vmatpush1.msra.mxu0 0.0
        %912 = vmatprep.subr.mxu0 0.0
        %913 = vmatpush1.msra.mxu0 0.0
        %914 = vmatprep.subr.mxu0 0.0
        %915 = vmatpush1.msra.mxu0 0.0
        %916 = vmatprep.subr.mxu0 0.0
        %917 = vmatpush1.msra.mxu0 0.0
        %918 = vmatprep.subr.mxu0 0.0
        %919 = vmatpush1.msra.mxu0 0.0
        %920 = vmatprep.subr.mxu0 0.0
        %921 = vmatpush1.msra.mxu0 0.0
        %922 = vmatprep.subr.mxu0 0.0
        %923 = vmatpush1.msra.mxu0 0.0
        %924 = vmatprep.subr.mxu0 0.0
        %925 = vmatpush1.msra.mxu0 0.0
        %926 = vmatprep.subr.mxu0 0.0
        %927 = vmatpush1.msra.mxu0 0.0
        %928 = vmatprep.subr.mxu0 0.0
        %929 = vmatpush1.msra.mxu0 0.0
        %930 = vmatprep.subr.mxu0 0.0
        %931 = vmatpush1.msra.mxu0 0.0
        %932 = vmatprep.subr.mxu0 0.0
        %933 = vmatpush1.msra.mxu0 0.0
        %934 = vmatprep.subr.mxu0 0.0
        %935 = vmatpush1.msra.mxu0 0.0
        %936 = vmatprep.subr.mxu0 0.0
        %937 = vmatpush1.msra.mxu0 0.0
        %938 = vmatprep.subr.mxu0 0.0
        %939 = vmatpush1.msra.mxu0 0.0
        %940 = vmatprep.subr.mxu0 0.0
        %941 = vmatpush1.msra.mxu0 0.0
        %942 = vmatprep.subr.mxu0 0.0
        %943 = vmatpush1.msra.mxu0 0.0
        %944 = vmatprep.subr.mxu0 0.0
        %945 = vmatpush1.msra.mxu0 0.0
        %946 = vmatprep.subr.mxu0 0.0
        %947 = vmatpush1.msra.mxu0 0.0
        %948 = vmatprep.subr.mxu0 0.0
        %949 = vmatpush1.msra.mxu0 0.0
        %950 = vmatprep.subr.mxu0 0.0
        %951 = vmatpush1.msra.mxu0 0.0
        %952 = vmatprep.mubr.f32.mxu0 0.0
        %953 = vmatmul.mubr.f32.gmra.mrb[0].mxu0 %v877
        %v954 = vpop.f32.mrb[0].mxu0
        %v955 = vadd.f32 0.0, %v954
        %v956 = vpop.f32.mrb[0].mxu0
        %v957 = vadd.f32 0.0, %v956
        %958 = vmatprep.mubr.f32.mxu0 0.0
        %959 = vmatmul.mubr.f32.gmra.mrb[0].mxu0 %v880
        %v960 = vpop.f32.mrb[0].mxu0
        %v961 = vadd.f32 0.0, %v960
        %v962 = vpop.f32.mrb[0].mxu0
        %v963 = vadd.f32 0.0, %v962
        %964 = vmatprep.mubr.f32.mxu0 0.0
        %965 = vmatmul.mubr.f32.gmra.mrb[0].mxu0 %v883
        %v966 = vpop.f32.mrb[0].mxu0
        %v967 = vadd.f32 0.0, %v966
        %v968 = vpop.f32.mrb[0].mxu0
        %v969 = vadd.f32 0.0, %v968
        %970 = vmatprep.mubr.f32.mxu0 0.0
        %971 = vmatmul.mubr.f32.gmra.mrb[0].mxu0 %v886
        %v972 = vpop.f32.mrb[0].mxu0
        %v973 = vadd.f32 0.0, %v972
        %v974 = vpop.f32.mrb[0].mxu0
        %v975 = vadd.f32 0.0, %v974
        %976 = vdwg.mxu0
        %v977 = vmul.f32 %v850, %v955
        %v978 = vmul.f32 %v852, %v957
        %v979 = vmul.f32 %v856, %v961
        %v980 = vmul.f32 %v858, %v963
        %v981 = vmul.f32 %v862, %v967
        %v982 = vmul.f32 %v864, %v969
        %v983 = vmul.f32 %v868, %v973
        %v984 = vmul.f32 %v870, %v975
        %v985 = vmul.f32 %v304, %v977
        %v986 = vmul.f32 %v305, %v978
        %v987 = vmul.f32 %v306, %v979
        %v988 = vmul.f32 %v307, %v980
        %v989 = vmul.f32 %v308, %v981
        %v990 = vmul.f32 %v309, %v982
        %v991 = vmul.f32 %v310, %v983
        %v992 = vmul.f32 %v311, %v984
        %993 = vst [vmem:[%s298] sm:$0xff] %v985
        %994 = vst [vmem:[%s298 + $0x8] sm:$0xff] %v986
        %995 = vst [vmem:[%s298 + $0x10] sm:$0xff] %v987
        %996 = vst [vmem:[%s298 + $0x18] sm:$0xff] %v988
        %997 = vst [vmem:[%s298 + $0x20] sm:$0xff] %v989
        %998 = vst [vmem:[%s298 + $0x28] sm:$0xff] %v990
        %999 = vst [vmem:[%s298 + $0x30] sm:$0xff] %v991
        %1000 = vst [vmem:[%s298 + $0x38] sm:$0xff] %v992
        %s1001 = sand.u32 %s203, 1
        %s1002 = scalar_lea.sflag [#allocation3], %s1001
        %s1003 = sand.u32 %s203, 1
        %s1004 = smul.addr %s1003, 64
        %s1005 = scalar_lea.vmem [#allocation2], %s1004
        // Predicated region
        $region53: #{tpu_custom_call.1} parent=51 // pred_check
          %p1006 = pneg %p213
        $region54: #{tpu_custom_call.1} parent=51 // pred_check_branch
          %1008 = sbr.rel (%p1006) target = $region56
        $region55: #{tpu_custom_call.1} parent=51 // pred_region
          %s1010 = ssub.s32 1024, 1024
          %1011 = vsyncadd %s1002, %s1010
          %s1012 = smul.addr %s22, 8
          %s1013 = smul.addr %s1012, 128
          %s1014 = scalar_lea.hbm %s8, %s1013
          %s1015 = sshll.u32 %s1005, 4
          %s1016 = int_to_ptr.vmem [resolvable:$true] %s1015
          %1021 = dma.vmem_to_hbm [thread:$0]  %s1016, 1024, %s1014, %s1002, 256, 256, 16
        $region56: #{tpu_custom_call.1} parent=51 // pred_fallthru
          _
      $region52: #{tpu_custom_call.1} parent=5 // pred_fallthru
        _
      %p1022 = scmp.le.s32.totalorder 2, %s17
      // Predicated region
      $region57: #{tpu_custom_call.1} parent=5 // pred_check
        %p1023 = pneg %p1022
      $region58: #{tpu_custom_call.1} parent=5 // pred_check_branch
        %1025 = sbr.rel (%p1023) target = $region60
      $region59: #{tpu_custom_call.1} parent=5 // pred_region
        %s1026 = ssub.s32 %s17, 2
        // Predicated region
        $region61: #{tpu_custom_call.1} parent=59 // pred_check
          %p1027 = pneg %p219
        $region62: #{tpu_custom_call.1} parent=59 // pred_check_branch
          %1029 = sbr.rel (%p1027) target = $region64
        $region63: #{tpu_custom_call.1} parent=59 // pred_region
          %s1030 = sand.u32 %s204, 1
          %s1031 = scalar_lea.sflag [#allocation3], %s1030
          %s1032 = sand.u32 %s204, 1
          %s1033 = smul.addr %s1032, 64
          %s1034 = scalar_lea.vmem [#allocation2], %s1033
          %1035 = dma.done %s1031, 1024
        $region64: #{tpu_custom_call.1} parent=59 // pred_fallthru
          _
      $region60: #{tpu_custom_call.1} parent=5 // pred_fallthru
        _
    $region6: #{tpu_custom_call.1} parent=1 // loop_footer
      %s21 = sadd.s32 1, %s17
    $region7: #{tpu_custom_call.1} parent=1 // loop_footer_branch
      %16 = sbr.rel target = $region3
    $region8: #{tpu_custom_call.1} parent=1 // loop_exit
      _
    %1036 = vsyncpa [#allocation3], 1
    %s1037 = scalar_lea.sflag [#allocation3], 1
    %1038 = vsyncpa %s1037, 1

</llo_original>
